<compile_context>
chip_gen: v7x
topology: tpu7x:2x2x1
jax: 0.10.0
libtpu: 0.0.40
codegen_flags: <defaults>
</compile_context>

<pallas_src>
import math

import jax
import jax.numpy as jnp
from jax.experimental import pallas as pl
from jax.experimental.pallas import tpu as pltpu


def _copy_kernel(x_ref, o_ref):
    # The "forward" hot path of the (abstract) base model: pass-through.
    o_ref[...] = x_ref[...]


def _tile(extent: int, unit: int, cap: int) -> int:
    """Largest divisor of `extent` that is a multiple of `unit` and <= cap.

    Falls back to the full extent (always a legal block size) if no such
    divisor exists or the extent is smaller than `unit`.
    """
    if extent <= unit:
        return extent
    hi = min(cap, extent)
    hi -= hi % unit
    for cand in range(hi, unit - 1, -unit):
        if extent % cand == 0:
            return cand
    return extent


@jax.jit
def _pallas_identity(x):
    """Tiled, lane-dense, buffer-aliased Pallas copy (subclass template)."""
    orig_shape = x.shape
    total = int(math.prod(orig_shape)) if orig_shape else 1

    # ---- flatten to a lane-dense 2-D slab (rows, L), L a multiple of 128 ----
    lane_cap = 1024
    L = None
    cand = min(lane_cap, (total // 128) * 128)
    while cand >= 128:
        if total % cand == 0:
            L = cand
            break
        cand -= 128
    if L is None:
        # total not divisible by 128: single full-extent block (still legal).
        rows, L = 1, total
    else:
        rows = total // L
    x2d = x.reshape(rows, L)

    # ---- pick tiles: (8,128)-aligned, <= 512 x 1024 (2 MiB f32 per tile) ----
    tr = _tile(rows, 8, 512)
    grid_rows = rows // tr
    if grid_rows >= 2 or L < 256 or L % 128 != 0:
        tc = L                                   # already lane-dense / not splittable
    else:
        # split the lane axis so the grid has >= 2 parallel steps (v7x dual-TC)
        tc = _tile(L, 128, max(128, L // 2))
    grid_cols = L // tc

    out2d = pl.pallas_call(
        _copy_kernel,
        out_shape=jax.ShapeDtypeStruct((rows, L), x.dtype),
        grid=(grid_rows, grid_cols),
        in_specs=[pl.BlockSpec((tr, tc), lambda i, j: (i, j))],
        out_specs=pl.BlockSpec((tr, tc), lambda i, j: (i, j)),
        input_output_aliases={0: 0},             # donate input buffer to output
        compiler_params=pltpu.CompilerParams(
            dimension_semantics=("parallel", "parallel"),
        ),
    )(x2d)

    return out2d.reshape(orig_shape)


class PallasBaseModel:
    """JAX/Pallas counterpart of tinybig.module.base_model.model."""

    def __init__(self, name: str = "model_name", device: str = "tpu", *args, **kwargs):
        self.name = name
        self.device = device

    def __call__(self, x, *, use_kernel: bool = False):
        return self.forward(x, use_kernel=use_kernel)

    def forward(self, x, *, use_kernel: bool = False):
        if not use_kernel:
            # Optimal base-class identity: no kernel launch, no HBM round trip.
            return x
        # Pallas copy kernel kept as the tiled/pipelined template for subclasses.
        return _pallas_identity(x)


if __name__ == "__main__":
    key = jax.random.PRNGKey(0)
    # Small NCHW input consistent with the (abstract) forward interface.
    x = jax.random.normal(key, (2, 4, 16, 16), dtype=jnp.float32)

    m = PallasBaseModel(name="base_model_pallas")

    # Run the Pallas kernel template once and block on it.
    y_kernel = m(x, use_kernel=True)
    y_kernel = jax.block_until_ready(y_kernel)

    # Default (optimal) identity path: kernel elided entirely.
    y_fast = jax.block_until_ready(m(x))

    assert y_kernel.shape == x.shape and y_kernel.dtype == x.dtype
    assert bool(jnp.allclose(y_kernel, x))
    assert bool(jnp.allclose(y_fast, x))

    print("KERNEL_OK")
</pallas_src>

<mosaic_0001>
module attributes {stable_mosaic.version = 11 : i64} {
  func.func @_copy_kernel(%arg0: i32, %arg1: i32, %arg2: memref<2x512xf32, #tpu.memory_space<vmem>>, %arg3: memref<2x512xf32, #tpu.memory_space<vmem>>) attributes {dimension_semantics = [#tpu.dimension_semantics<parallel>, #tpu.dimension_semantics<parallel>], iteration_bounds = array<i64: 1, 2>, scalar_prefetch = 0 : i64, scratch_operands = 0 : i64, tpu.core_type = #tpu.core_type<tc>, window_params = [{transform_indices = @transform_0, window_bounds = array<i64: 2, 512>}, {transform_indices = @transform_1, window_bounds = array<i64: 2, 512>}]} {
    %c0 = arith.constant 0 : index
    %c0_0 = arith.constant 0 : index
    %0 = vector.load %arg2[%c0, %c0_0] : memref<2x512xf32, #tpu.memory_space<vmem>>, vector<2x512xf32>
    %c0_1 = arith.constant 0 : index
    %c0_2 = arith.constant 0 : index
    %1 = vector.load %arg3[%c0_1, %c0_2] : memref<2x512xf32, #tpu.memory_space<vmem>>, vector<2x512xf32>
    tpu.vector_store %arg3[%c0_1, %c0_2], %0 {strides = array<i32>} : memref<2x512xf32, #tpu.memory_space<vmem>>, vector<2x512xf32>,
    return
  }
  func.func @transform_0(%arg0: i32, %arg1: i32) -> (i32, i32) {
    %c0_i32 = arith.constant 0 : i32
    return %arg0, %arg1 : i32, i32
  }
  func.func @transform_1(%arg0: i32, %arg1: i32) -> (i32, i32) {
    %c0_i32 = arith.constant 0 : i32
    return %arg0, %arg1 : i32, i32
  }
}

</mosaic_0001>

<llo_original>
// kernel: _pallas_identity.1
$region0: #{_pallas_identity.1}
  #allocation0 [shape = 'u32[]', space=smem, size = 0x4, offset = 0x4, fixed_abs, tag = 'smem constant byte address 0x4 - core index']
  #allocation1 [shape = 'u32[144,128]{1,0:T(1,128)}', space=vmem, size = 0x12000, scoped, tag = 'internal scratch']
  %s0 = inlined_call_operand.vmem [shape: f32[2,1024], index: 0, kind: input, shape index: {}, may-alias: {0,1}]
  %s1 = inlined_call_operand.vmem [shape: f32[2,1024], index: 1, kind: output, shape index: {}, may-alias: {0,1}]
  %s2 = sld [smem:[#allocation0]]
  $region37: #{_pallas_identity.1} parent=0
    _
  %s4 = ssub.s32 1, %s2
  %s5 = scalar_select 0, %s4, %s2
  loop: start=0, step=1, limit=4
  $region2: #{_pallas_identity.1} parent=0 // loop_pre_header
    _
  $region3: #{_pallas_identity.1} parent=0 // loop_header
    %s7 = sphi 0, %s11
    %p8 = scmp.ge.s32.totalorder %s7, 4
    %s14 = sphi 0, %s26
    %s15 = sphi 0, %s22
    %s16 = sphi 0, %s14
    %s17 = sphi 0, %s15
    %s18 = sphi 0, %s16
    %s19 = sphi 0, %s17
    %s31 = sphi 0, %s33
    %s34 = sphi 0, %s31
    %s35 = sphi 0, %s34
    %s51 = sphi 0, %s35
    %s59 = sphi 0, %s61
    %s62 = sphi 0, %s59
    %s63 = sphi 0, %s62
    %s79 = sphi 0, %s63
  $region4: #{_pallas_identity.1} parent=0 // loop_header_branch
    %10 = sbr.rel (%p8) target = $region8
  $region5: #{_pallas_identity.1} parent=0 // loop_body
    %s12 = ssub.s32 %s7, 1
    %s13 = ssub.s32 %s7, 2
    %s20 = sadd.s32 1, %s15
    %p21 = scmp.ge.s32.totalorder %s20, 2
    %s22 = scalar_select %p21, 0, %s20
    %s23 = sadd.s32 1, %s14
    %s24 = scalar_select %p21, %s23, %s14
    %p25 = scmp.ge.s32.totalorder %s24, 1
    %s26 = scalar_select %p25, 0, %s24
    %s27 = ssub.s32 %s14, %s26
    %s28 = ssub.s32 %s15, %s22
    %s29 = sor.u32 %s27, %s28
    %p30 = scmp.eq.s32.totalorder %s29, 0
    %s32 = sadd.s32 %s31, 1
    %s33 = scalar_select %p30, %s31, %s32
    %p36 = pneg %p30
    %p37 = scmp.eq.s32.totalorder %s7, 1
    %p38 = por %p36, %p37
    %p39 = scmp.ne.s32.totalorder %s31, %s34
    %p40 = scmp.eq.s32.totalorder %s7, 0
    %p41 = por %p39, %p40
    %p42 = scmp.ne.s32.totalorder %s31, %s34
    %p43 = scmp.eq.s32.totalorder %s12, 1
    %p44 = por %p42, %p43
    %p45 = scmp.ne.s32.totalorder %s34, %s35
    %p46 = scmp.eq.s32.totalorder %s12, 0
    %p47 = por %p45, %p46
    %p48 = scmp.ne.s32.totalorder %s34, %s35
    %p49 = scmp.eq.s32.totalorder %s13, 1
    %p50 = por %p48, %p49
    %p52 = scmp.ne.s32.totalorder %s35, %s51
    %p53 = scmp.eq.s32.totalorder %s13, 0
    %p54 = por %p52, %p53
    %s55 = ssub.s32 %s14, %s26
    %s56 = ssub.s32 %s15, %s22
    %s57 = sor.u32 %s55, %s56
    %p58 = scmp.eq.s32.totalorder %s57, 0
    %s60 = sadd.s32 %s59, 1
    %s61 = scalar_select %p58, %s59, %s60
    %p64 = pneg %p58
    %p65 = scmp.eq.s32.totalorder %s7, 1
    %p66 = por %p64, %p65
    %p67 = scmp.ne.s32.totalorder %s59, %s62
    %p68 = scmp.eq.s32.totalorder %s7, 0
    %p69 = por %p67, %p68
    %p70 = scmp.ne.s32.totalorder %s59, %s62
    %p71 = scmp.eq.s32.totalorder %s12, 1
    %p72 = por %p70, %p71
    %p73 = scmp.ne.s32.totalorder %s62, %s63
    %p74 = scmp.eq.s32.totalorder %s12, 0
    %p75 = por %p73, %p74
    %p76 = scmp.ne.s32.totalorder %s62, %s63
    %p77 = scmp.eq.s32.totalorder %s13, 1
    %p78 = por %p76, %p77
    %p80 = scmp.ne.s32.totalorder %s63, %s79
    %p81 = scmp.eq.s32.totalorder %s13, 0
    %p82 = por %p80, %p81
    %p83 = scmp.le.s32.totalorder 1, %s7
    %p84 = scmp.lt.s32.totalorder %s7, 3
    %p85 = pnand %p83, %p84
    %p86 = pneg %p85
    // Predicated region
    $region9: #{_pallas_identity.1} parent=5 // pred_check
      _
    $region10: #{_pallas_identity.1} parent=5 // pred_check_branch
      %88 = sbr.rel (%p85) target = $region12
    $region11: #{_pallas_identity.1} parent=5 // pred_region
      %s89 = ssub.s32 %s7, 1
    $region12: #{_pallas_identity.1} parent=5 // pred_fallthru
      _
    %p90 = scmp.lt.s32.totalorder %s7, 2
    // Predicated region
    $region13: #{_pallas_identity.1} parent=5 // pred_check
      %p91 = pneg %p90
    $region14: #{_pallas_identity.1} parent=5 // pred_check_branch
      %93 = sbr.rel (%p91) target = $region16
    $region15: #{_pallas_identity.1} parent=5 // pred_region
      // Predicated region
      $region17: #{_pallas_identity.1} parent=15 // pred_check
        %p94 = pneg %p41
      $region18: #{_pallas_identity.1} parent=15 // pred_check_branch
        %96 = sbr.rel (%p94) target = $region20
      $region19: #{_pallas_identity.1} parent=15 // pred_region
        %s97 = smul.u32 4, %s15
        %p98 = scmp.lt.s32.totalorder %s14, 0
        %s99 = scalar_select %p98, %s14, 0
        %p100 = scmp.lt.s32.totalorder %s97, 7
        %s101 = scalar_select %p100, %s97, 7
        %s102 = smul.addr %s99, 8
        %s103 = sadd.s32 %s101, %s102
        %s104 = smul.addr %s103, 2
        %s105 = scalar_lea.vmem %s0, %s104
        %s106 = smul.u32 4, %s15
      $region20: #{_pallas_identity.1} parent=15 // pred_fallthru
        _
    $region16: #{_pallas_identity.1} parent=5 // pred_fallthru
      _
    %p107 = scmp.le.s32.totalorder 1, %s7
    %p108 = scmp.lt.s32.totalorder %s7, 3
    %p109 = pnand %p107, %p108
    %p110 = pneg %p109
    // Predicated region
    $region21: #{_pallas_identity.1} parent=5 // pred_check
      _
    $region22: #{_pallas_identity.1} parent=5 // pred_check_branch
      %112 = sbr.rel (%p109) target = $region24
    $region23: #{_pallas_identity.1} parent=5 // pred_region
      %s113 = ssub.s32 %s7, 1
      %s114 = smul.u32 4, %s17
      %p115 = scmp.lt.s32.totalorder %s16, 0
      %s116 = scalar_select %p115, %s16, 0
      %p117 = scmp.lt.s32.totalorder %s114, 7
      %s118 = scalar_select %p117, %s114, 7
      %s119 = smul.addr %s116, 8
      %s120 = sadd.s32 %s118, %s119
      %s121 = smul.addr %s120, 2
      %s122 = scalar_lea.vmem %s0, %s121
      %p123 = pneg %p47
      %p124 = pneg %p44
      %p125 = pneg %p75
      %p126 = pneg %p72
      %s127 = smul.u32 4, %s17
      %p128 = scmp.lt.s32.totalorder %s16, 0
      %s129 = scalar_select %p128, %s16, 0
      %p130 = scmp.lt.s32.totalorder %s127, 7
      %s131 = scalar_select %p130, %s127, 7
      %s132 = smul.addr %s129, 8
      %s133 = sadd.s32 %s131, %s132
      %s134 = smul.addr %s133, 2
      %s135 = scalar_lea.vmem %s1, %s134
      %s136 = smul.u32 4, %s17
      %p137 = scmp.lt.s32.totalorder %s16, 0
      %s138 = scalar_select %p137, %s16, 0
      %p139 = scmp.lt.s32.totalorder %s136, 7
      %s140 = scalar_select %p139, %s136, 7
      %s141 = smul.addr %s138, 8
      %s142 = sadd.s32 %s140, %s141
      %s143 = smul.addr %s142, 2
      %s144 = scalar_lea.vmem %s0, %s143
      %s145 = smul.u32 4, %s17
      %s146 = smul.u32 4, %s17
      %p147 = scmp.lt.s32.totalorder %s16, 0
      %s148 = scalar_select %p147, %s16, 0
      %p149 = scmp.lt.s32.totalorder %s146, 7
      %s150 = scalar_select %p149, %s146, 7
      %s151 = smul.addr %s148, 8
      %s152 = sadd.s32 %s150, %s151
      %s153 = smul.addr %s152, 2
      %s154 = scalar_lea.vmem %s1, %s153
      %s155 = smul.u32 4, %s17
      %v156 = vld [vmem:[%s144] sm:$0xff]
      %157 = vst [vmem:[%s154] sm:$0xff] %v156
      %s158 = smul.u32 4, %s17
      %p159 = scmp.lt.s32.totalorder %s16, 0
      %s160 = scalar_select %p159, %s16, 0
      %p161 = scmp.lt.s32.totalorder %s158, 7
      %s162 = scalar_select %p161, %s158, 7
      %s163 = smul.addr %s160, 8
      %s164 = sadd.s32 %s162, %s163
      %s165 = smul.addr %s164, 2
      %s166 = scalar_lea.vmem %s1, %s165
      // Predicated region
      $region25: #{_pallas_identity.1} parent=23 // pred_check
        %p167 = pneg %p72
      $region26: #{_pallas_identity.1} parent=23 // pred_check_branch
        %169 = sbr.rel (%p167) target = $region28
      $region27: #{_pallas_identity.1} parent=23 // pred_region
        %s170 = smul.u32 4, %s17
      $region28: #{_pallas_identity.1} parent=23 // pred_fallthru
        _
    $region24: #{_pallas_identity.1} parent=5 // pred_fallthru
      _
    %p171 = scmp.le.s32.totalorder 2, %s7
    // Predicated region
    $region29: #{_pallas_identity.1} parent=5 // pred_check
      %p172 = pneg %p171
    $region30: #{_pallas_identity.1} parent=5 // pred_check_branch
      %174 = sbr.rel (%p172) target = $region32
    $region31: #{_pallas_identity.1} parent=5 // pred_region
      %s175 = ssub.s32 %s7, 2
      // Predicated region
      $region33: #{_pallas_identity.1} parent=31 // pred_check
        %p176 = pneg %p78
      $region34: #{_pallas_identity.1} parent=31 // pred_check_branch
        %178 = sbr.rel (%p176) target = $region36
      $region35: #{_pallas_identity.1} parent=31 // pred_region
        %s179 = smul.u32 4, %s19
        %p180 = scmp.lt.s32.totalorder %s18, 0
        %s181 = scalar_select %p180, %s18, 0
        %p182 = scmp.lt.s32.totalorder %s179, 7
        %s183 = scalar_select %p182, %s179, 7
        %s184 = smul.addr %s181, 8
        %s185 = sadd.s32 %s183, %s184
        %s186 = smul.addr %s185, 2
        %s187 = scalar_lea.vmem %s1, %s186
      $region36: #{_pallas_identity.1} parent=31 // pred_fallthru
        _
    $region32: #{_pallas_identity.1} parent=5 // pred_fallthru
      _
  $region6: #{_pallas_identity.1} parent=0 // loop_footer
    %s11 = sadd.s32 1, %s7
  $region7: #{_pallas_identity.1} parent=0 // loop_footer_branch
    %6 = sbr.rel target = $region3
  $region8: #{_pallas_identity.1} parent=0 // loop_exit
    _

</llo_original>
